<compile_context>
chip_gen: v7x
topology: tpu7x:2x2x1
jax: 0.10.0
libtpu: 0.0.40
codegen_flags: <defaults>
</compile_context>

<pallas_src>
import jax
import jax.numpy as jnp
from jax import lax
from jax.experimental import pallas as pl
from jax.experimental.pallas import tpu as pltpu

# Global constant referenced (but not defined) in the original source.
BALANCING_WEIGHTS = (1.0, 2.0, 5.0, 10.0, 30.0)


def _compute_weights(target, mask):
    """JAX mirror of the PyTorch compute_weights() (reference path only)."""
    w = jnp.full(target.shape, BALANCING_WEIGHTS[0], dtype=jnp.float32)
    for lo, hi in zip(BALANCING_WEIGHTS[:-1], BALANCING_WEIGHTS[1:]):
        w = jnp.where(target >= hi, w + (hi - lo), w)
    return w * mask


def _make_kernel(b_block, batch, mask_tail):
    """Kernel factory; closes over static tiling parameters."""

    def kernel(pred_ref, tgt_ref, msk_ref, out_ref, acc_ref):
        # grid = (num_batch_chunks, seq_len); seq (reduction) axis is innermost.
        i = pl.program_id(1)

        @pl.when(i == 0)
        def _init():
            acc_ref[...] = jnp.zeros_like(acc_ref)

        # Views are (b_block, H, W); predicted is already "permuted" via its
        # index_map.  bf16 / int8 inputs upcast here (VPU), not in the wrapper.
        p = pred_ref[...].astype(jnp.float32)
        t = tgt_ref[...].astype(jnp.float32)
        m = msk_ref[...].astype(jnp.float32)

        diff = jnp.abs(p - t)

        if mask_tail:
            # Partial last batch chunk: zero out invalid rows.  jnp.where (not
            # multiply) so undefined padding values (possibly NaN/Inf) cannot
            # poison the sums.
            j = pl.program_id(0)
            rows_left = batch - j * b_block
            row_ids = lax.broadcasted_iota(jnp.int32, (b_block, 1, 1), 0)
            valid = row_ids < rows_left
            m = jnp.where(valid, m, 0.0)
            diff = jnp.where(valid, diff, 0.0)

        # Piecewise-constant weight select chain: bit-equivalent to the
        # cumulative "w += (hi - lo) * (t >= hi)" form, but no full-tile fill
        # and no adds (weights for invalid rows are harmless: they multiply 0).
        wgt = jnp.float32(BALANCING_WEIGHTS[0])
        for thr in BALANCING_WEIGHTS[1:]:
            wgt = jnp.where(t >= jnp.float32(thr), jnp.float32(thr), wgt)

        md = m * diff  # mask * |diff|, shared by both loss terms

        # Reduce only over the leading (non-tiled) batch axis -> pure VPU adds,
        # no per-step cross-lane/XLU reduction and no scalar RMW chain.
        acc_ref[0] += jnp.sum(wgt * md, axis=0)    # sum(weights * mask * |d|)
        acc_ref[1] += jnp.sum(diff - md, axis=0)   # sum((1 - mask) * |d|)
        acc_ref[2] += jnp.sum(m, axis=0)           # sum(mask)

        # One cross-sublane reduction + one lane-dense store per batch chunk.
        @pl.when(i == pl.num_programs(1) - 1)
        def _finalize():
            out_ref[...] = jnp.sum(acc_ref[...], axis=1)   # (3, H, W) -> (3, W)

    return kernel


def _vmem_capacity_bytes():
    """Physical per-core VMEM; conservative fallback if the query is missing."""
    try:
        return int(pltpu.get_tpu_info().vmem_capacity_bytes)
    except Exception:
        return 64 << 20  # v7x per-TensorCore VMEM (smallest generation)


def _pick_batch_block(batch, height, width, itemsizes, vmem_limit):
    """Choose the per-chunk batch block from the actual VMEM budget.

    Budget: 3 inputs x 2 pipeline buffers of one (b_block, H, W) block each,
    plus the (3, H, W) f32 accumulator scratch and ~2 MiB headroom, all inside
    `vmem_limit`.
    """
    scratch_bytes = 3 * height * width * 4
    headroom = 2 << 20
    per_block_cap = max(1, (vmem_limit - scratch_bytes - headroom) // 6)
    row_bytes = max(1, height * width * max(itemsizes))
    b_cap = max(1, per_block_cap // row_bytes)

    b_block = max(1, min(batch, b_cap))

    # v7x dual-TC: guarantee >= 2 batch chunks so the "parallel" grid axis can
    # shard across both TensorCores -- but only when ceil(B/2) still satisfies
    # the ~8-row floor that amortizes the per-step accumulator read-modify-write.
    half = -(-batch // 2)
    if b_block >= batch and half >= 8:
        b_block = min(half, b_cap)

    # Prefer an exact divisor of B near the target so the masked-tail path is
    # avoided when possible (search only within ~25% of the target).
    if batch % b_block:
        lo = max(1, (b_block * 3) // 4)
        for cand in range(b_block, lo - 1, -1):
            if batch % cand == 0:
                b_block = cand
                break

    return int(max(1, min(b_block, batch)))


def balanced_weighted_mae_loss(predicted, target, mask, w=0.5, b_block=None):
    """Pallas implementation of BalancedWeightedMaeLoss.forward -> scalar loss."""
    assert 0.0 < w <= 1.0
    S, B, H, W = predicted.shape
    # predicted.permute(1,0,2,3) - target is elementwise only when seq == batch
    # (same implicit requirement as the PyTorch module).
    assert S == B, "seq_len must equal batch_size for the permute to be elementwise"
    assert target.shape == (S, B, H, W) and mask.shape == (S, B, H, W)

    vmem_phys = _vmem_capacity_bytes()
    vmem_limit = int((vmem_phys * 3) // 4)   # ~96 MiB on v5e/v6e, ~48 MiB on v7x

    if b_block is None:
        itemsizes = (predicted.dtype.itemsize, target.dtype.itemsize,
                     mask.dtype.itemsize)
        b_block = _pick_batch_block(B, H, W, itemsizes, vmem_limit)
    b_block = int(b_block)
    nb = (B + b_block - 1) // b_block
    mask_tail = (B % b_block) != 0

    kernel = _make_kernel(b_block, B, mask_tail)

    partials = pl.pallas_call(
        kernel,
        out_shape=jax.ShapeDtypeStruct((nb, 3, W), jnp.float32),
        grid_spec=pltpu.PrefetchScalarGridSpec(
            num_scalar_prefetch=0,
            grid=(nb, S),
            in_specs=[
                # predicted[b, i] for b in chunk j  <=>  permute(1,0,2,3)[i, b]
                pl.BlockSpec((b_block, None, H, W), lambda j, i: (j, i, 0, 0)),
                # target[i, b] / mask[i, b] for b in chunk j
                pl.BlockSpec((None, b_block, H, W), lambda j, i: (i, j, 0, 0)),
                pl.BlockSpec((None, b_block, H, W), lambda j, i: (i, j, 0, 0)),
            ],
            out_specs=pl.BlockSpec((None, 3, W), lambda j, i: (j, 0, 0)),
            scratch_shapes=[pltpu.VMEM((3, H, W), jnp.float32)],
        ),
        compiler_params=pltpu.CompilerParams(
            dimension_semantics=("parallel", "arbitrary"),
            vmem_limit_bytes=vmem_limit),
    )(predicted, target, mask)

    # Tiny final combine stays in XLA: sum per-chunk partials, then apply the
    # data-dependent z_fraction branch and the (1 - w) / w scaling.
    sums = jnp.sum(partials, axis=(0, 2))    # [sum w*m*|d|, sum (1-m)*|d|, sum m]
    total = jnp.float32(S * B * H * W)
    nz_loss = sums[0] / total
    zero_count = total - sums[2]             # sum(1 - mask), fixed up here
    z_fraction = zero_count / total
    z_loss = jnp.where(z_fraction > 0.0,
                       sums[1] / jnp.maximum(zero_count, jnp.float32(1e-12)),
                       jnp.float32(0.0))
    return nz_loss + (1.0 - w) / w * z_loss


def _reference(predicted, target, mask, w=0.5):
    """Pure-JAX reference mirroring the PyTorch forward."""
    pred_perm = jnp.swapaxes(predicted, 0, 1).astype(jnp.float32)
    t = target.astype(jnp.float32)
    m = mask.astype(jnp.float32)
    weights = _compute_weights(t, m)
    diff = jnp.abs(pred_perm - t)
    nz_loss = jnp.mean(weights * diff)
    z_fraction = jnp.mean(1.0 - m)
    z_loss = jnp.where(z_fraction > 0.0,
                       jnp.mean((1.0 - m) * diff) / jnp.maximum(z_fraction, 1e-12),
                       0.0)
    return nz_loss + (1.0 - w) / w * z_loss


if __name__ == "__main__":
    key = jax.random.PRNGKey(0)
    k1, k2, k3 = jax.random.split(key, 3)

    # seq_len == batch_size (required by the module's permute-then-subtract);
    # W = 128 keeps the kernel's lane dimension dense.
    S = B = 4
    H, W = 16, 128
    predicted = jax.random.uniform(k1, (S, B, H, W), jnp.float32) * 35.0
    target = jax.random.uniform(k2, (S, B, H, W), jnp.float32) * 35.0
    mask = (jax.random.uniform(k3, (S, B, H, W)) > 0.3).astype(jnp.float32)

    loss = jax.block_until_ready(
        balanced_weighted_mae_loss(predicted, target, mask, w=0.5))
    ref = jax.block_until_ready(_reference(predicted, target, mask, w=0.5))
    assert jnp.allclose(loss, ref, rtol=1e-4, atol=1e-3), (loss, ref)

    # Second check: non-divisor batch (masked last chunk) + multi-chunk grid
    # (exercises the v7x dual-TC / "parallel" chunk path and the tail mask).
    S2 = B2 = 6
    p2 = jax.random.uniform(k1, (S2, B2, H, W), jnp.float32) * 35.0
    t2 = jax.random.uniform(k2, (S2, B2, H, W), jnp.float32) * 35.0
    m2 = (jax.random.uniform(k3, (S2, B2, H, W)) > 0.3).astype(jnp.float32)
    loss2 = jax.block_until_ready(
        balanced_weighted_mae_loss(p2, t2, m2, w=0.7, b_block=4))
    ref2 = jax.block_until_ready(_reference(p2, t2, m2, w=0.7))
    assert jnp.allclose(loss2, ref2, rtol=1e-4, atol=1e-3), (loss2, ref2)

    print("KERNEL_OK")
</pallas_src>

<mosaic_0001>
module attributes {stable_mosaic.version = 11 : i64} {
  func.func @kernel(%arg0: i32, %arg1: i32, %arg2: memref<4x1x16x128xf32, #tpu.memory_space<vmem>>, %arg3: memref<1x4x16x128xf32, #tpu.memory_space<vmem>>, %arg4: memref<1x4x16x128xf32, #tpu.memory_space<vmem>>, %arg5: memref<1x3x128xf32, #tpu.memory_space<vmem>>, %arg6: memref<3x16x128xf32, #tpu.memory_space<vmem>>) attributes {dimension_semantics = [#tpu.dimension_semantics<parallel>, #tpu.dimension_semantics<arbitrary>], iteration_bounds = array<i64: 1, 4>, scalar_prefetch = 0 : i64, scratch_operands = 1 : i64, tpu.core_type = #tpu.core_type<tc>, window_params = [{transform_indices = @transform_0, window_bounds = array<i64: 4, 1, 16, 128>}, {transform_indices = @transform_1, window_bounds = array<i64: 1, 4, 16, 128>}, {transform_indices = @transform_2, window_bounds = array<i64: 1, 4, 16, 128>}, {transform_indices = @transform_3, window_bounds = array<i64: 1, 3, 128>}]} {
    %c0_i32 = arith.constant 0 : i32
    %0 = arith.cmpi eq, %arg1, %c0_i32 : i32
    %1 = arith.extui %0 : i1 to i32
    %c0_i32_0 = arith.constant 0 : i32
    %2 = arith.cmpi ne, %1, %c0_i32_0 : i32
    scf.if %2 {
      %cst_40 = arith.constant 0.000000e+00 : f32
      %55 = vector.broadcast %cst_40 : f32 to vector<3x16x128xf32>
      %c0_41 = arith.constant 0 : index
      %c0_42 = arith.constant 0 : index
      %c0_43 = arith.constant 0 : index
      %56 = vector.load %arg6[%c0_41, %c0_42, %c0_43] : memref<3x16x128xf32, #tpu.memory_space<vmem>>, vector<3x16x128xf32>
      tpu.vector_store %arg6[%c0_41, %c0_42, %c0_43], %55 {strides = array<i32>} : memref<3x16x128xf32, #tpu.memory_space<vmem>>, vector<3x16x128xf32>,
    } else {
    }
    %c0 = arith.constant 0 : index
    %c0_1 = arith.constant 0 : index
    %c0_2 = arith.constant 0 : index
    %c0_3 = arith.constant 0 : index
    %3 = vector.load %arg2[%c0, %c0_1, %c0_2, %c0_3] : memref<4x1x16x128xf32, #tpu.memory_space<vmem>>, vector<4x1x16x128xf32>
    %4 = vector.shape_cast %3 : vector<4x1x16x128xf32> to vector<4x16x128xf32>
    %c0_4 = arith.constant 0 : index
    %c0_5 = arith.constant 0 : index
    %c0_6 = arith.constant 0 : index
    %c0_7 = arith.constant 0 : index
    %5 = vector.load %arg3[%c0_4, %c0_5, %c0_6, %c0_7] : memref<1x4x16x128xf32, #tpu.memory_space<vmem>>, vector<1x4x16x128xf32>
    %6 = vector.shape_cast %5 : vector<1x4x16x128xf32> to vector<4x16x128xf32>
    %c0_8 = arith.constant 0 : index
    %c0_9 = arith.constant 0 : index
    %c0_10 = arith.constant 0 : index
    %c0_11 = arith.constant 0 : index
    %7 = vector.load %arg4[%c0_8, %c0_9, %c0_10, %c0_11] : memref<1x4x16x128xf32, #tpu.memory_space<vmem>>, vector<1x4x16x128xf32>
    %8 = vector.shape_cast %7 : vector<1x4x16x128xf32> to vector<4x16x128xf32>
    %9 = arith.subf %4, %6 : vector<4x16x128xf32>
    %10 = math.absf %9 : vector<4x16x128xf32>
    %cst = arith.constant 2.000000e+00 : f32
    %11 = vector.broadcast %cst : f32 to vector<4x16x128xf32>
    %12 = arith.cmpf oge, %6, %11 : vector<4x16x128xf32>
    %cst_12 = arith.constant 2.000000e+00 : f32
    %cst_13 = arith.constant 1.000000e+00 : f32
    %13 = vector.broadcast %cst_12 : f32 to vector<4x16x128xf32>
    %14 = vector.broadcast %cst_13 : f32 to vector<4x16x128xf32>
    %15 = arith.select %12, %13, %14 : vector<4x16x128xi1>, vector<4x16x128xf32>
    %cst_14 = arith.constant 5.000000e+00 : f32
    %16 = vector.broadcast %cst_14 : f32 to vector<4x16x128xf32>
    %17 = arith.cmpf oge, %6, %16 : vector<4x16x128xf32>
    %cst_15 = arith.constant 5.000000e+00 : f32
    %18 = vector.broadcast %cst_15 : f32 to vector<4x16x128xf32>
    %19 = arith.select %17, %18, %15 : vector<4x16x128xi1>, vector<4x16x128xf32>
    %cst_16 = arith.constant 1.000000e+01 : f32
    %20 = vector.broadcast %cst_16 : f32 to vector<4x16x128xf32>
    %21 = arith.cmpf oge, %6, %20 : vector<4x16x128xf32>
    %cst_17 = arith.constant 1.000000e+01 : f32
    %22 = vector.broadcast %cst_17 : f32 to vector<4x16x128xf32>
    %23 = arith.select %21, %22, %19 : vector<4x16x128xi1>, vector<4x16x128xf32>
    %cst_18 = arith.constant 3.000000e+01 : f32
    %24 = vector.broadcast %cst_18 : f32 to vector<4x16x128xf32>
    %25 = arith.cmpf oge, %6, %24 : vector<4x16x128xf32>
    %cst_19 = arith.constant 3.000000e+01 : f32
    %26 = vector.broadcast %cst_19 : f32 to vector<4x16x128xf32>
    %27 = arith.select %25, %26, %23 : vector<4x16x128xi1>, vector<4x16x128xf32>
    %28 = arith.mulf %8, %10 : vector<4x16x128xf32>
    %c0_20 = arith.constant 0 : index
    %c0_21 = arith.constant 0 : index
    %c0_22 = arith.constant 0 : index
    %29 = vector.load %arg6[%c0_20, %c0_21, %c0_22] : memref<3x16x128xf32, #tpu.memory_space<vmem>>, vector<1x16x128xf32>
    %30 = vector.shape_cast %29 : vector<1x16x128xf32> to vector<16x128xf32>
    %31 = arith.mulf %27, %28 : vector<4x16x128xf32>
    %cst_23 = arith.constant dense<0.000000e+00> : vector<16x128xf32>
    %32 = vector.multi_reduction <add>, %31, %cst_23 [0] : vector<4x16x128xf32> to vector<16x128xf32>
    %33 = arith.addf %30, %32 : vector<16x128xf32>
    %c0_24 = arith.constant 0 : index
    %c0_25 = arith.constant 0 : index
    %c0_26 = arith.constant 0 : index
    %34 = vector.load %arg6[%c0_24, %c0_25, %c0_26] : memref<3x16x128xf32, #tpu.memory_space<vmem>>, vector<1x16x128xf32>
    %35 = vector.shape_cast %34 : vector<1x16x128xf32> to vector<16x128xf32>
    %36 = vector.shape_cast %33 : vector<16x128xf32> to vector<1x16x128xf32>
    tpu.vector_store %arg6[%c0_24, %c0_25, %c0_26], %36 {strides = array<i32>} : memref<3x16x128xf32, #tpu.memory_space<vmem>>, vector<1x16x128xf32>,
    %c1 = arith.constant 1 : index
    %c0_27 = arith.constant 0 : index
    %c0_28 = arith.constant 0 : index
    %37 = vector.load %arg6[%c1, %c0_27, %c0_28] : memref<3x16x128xf32, #tpu.memory_space<vmem>>, vector<1x16x128xf32>
    %38 = vector.shape_cast %37 : vector<1x16x128xf32> to vector<16x128xf32>
    %39 = arith.subf %10, %28 : vector<4x16x128xf32>
    %cst_29 = arith.constant dense<0.000000e+00> : vector<16x128xf32>
    %40 = vector.multi_reduction <add>, %39, %cst_29 [0] : vector<4x16x128xf32> to vector<16x128xf32>
    %41 = arith.addf %38, %40 : vector<16x128xf32>
    %c1_30 = arith.constant 1 : index
    %c0_31 = arith.constant 0 : index
    %c0_32 = arith.constant 0 : index
    %42 = vector.load %arg6[%c1_30, %c0_31, %c0_32] : memref<3x16x128xf32, #tpu.memory_space<vmem>>, vector<1x16x128xf32>
    %43 = vector.shape_cast %42 : vector<1x16x128xf32> to vector<16x128xf32>
    %44 = vector.shape_cast %41 : vector<16x128xf32> to vector<1x16x128xf32>
    tpu.vector_store %arg6[%c1_30, %c0_31, %c0_32], %44 {strides = array<i32>} : memref<3x16x128xf32, #tpu.memory_space<vmem>>, vector<1x16x128xf32>,
    %c2 = arith.constant 2 : index
    %c0_33 = arith.constant 0 : index
    %c0_34 = arith.constant 0 : index
    %45 = vector.load %arg6[%c2, %c0_33, %c0_34] : memref<3x16x128xf32, #tpu.memory_space<vmem>>, vector<1x16x128xf32>
    %46 = vector.shape_cast %45 : vector<1x16x128xf32> to vector<16x128xf32>
    %cst_35 = arith.constant dense<0.000000e+00> : vector<16x128xf32>
    %47 = vector.multi_reduction <add>, %8, %cst_35 [0] : vector<4x16x128xf32> to vector<16x128xf32>
    %48 = arith.addf %46, %47 : vector<16x128xf32>
    %c2_36 = arith.constant 2 : index
    %c0_37 = arith.constant 0 : index
    %c0_38 = arith.constant 0 : index
    %49 = vector.load %arg6[%c2_36, %c0_37, %c0_38] : memref<3x16x128xf32, #tpu.memory_space<vmem>>, vector<1x16x128xf32>
    %50 = vector.shape_cast %49 : vector<1x16x128xf32> to vector<16x128xf32>
    %51 = vector.shape_cast %48 : vector<16x128xf32> to vector<1x16x128xf32>
    tpu.vector_store %arg6[%c2_36, %c0_37, %c0_38], %51 {strides = array<i32>} : memref<3x16x128xf32, #tpu.memory_space<vmem>>, vector<1x16x128xf32>,
    %c3_i32 = arith.constant 3 : i32
    %52 = arith.cmpi eq, %arg1, %c3_i32 : i32
    %53 = arith.extui %52 : i1 to i32
    %c0_i32_39 = arith.constant 0 : i32
    %54 = arith.cmpi ne, %53, %c0_i32_39 : i32
    scf.if %54 {
      %c0_40 = arith.constant 0 : index
      %c0_41 = arith.constant 0 : index
      %c0_42 = arith.constant 0 : index
      %55 = vector.load %arg6[%c0_40, %c0_41, %c0_42] : memref<3x16x128xf32, #tpu.memory_space<vmem>>, vector<3x16x128xf32>
      %cst_43 = arith.constant dense<0.000000e+00> : vector<3x128xf32>
      %56 = vector.multi_reduction <add>, %55, %cst_43 [1] : vector<3x16x128xf32> to vector<3x128xf32>
      %c0_44 = arith.constant 0 : index
      %c0_45 = arith.constant 0 : index
      %c0_46 = arith.constant 0 : index
      %57 = vector.load %arg5[%c0_44, %c0_45, %c0_46] : memref<1x3x128xf32, #tpu.memory_space<vmem>>, vector<1x3x128xf32>
      %58 = vector.shape_cast %57 : vector<1x3x128xf32> to vector<3x128xf32>
      %59 = vector.shape_cast %56 : vector<3x128xf32> to vector<1x3x128xf32>
      tpu.vector_store %arg5[%c0_44, %c0_45, %c0_46], %59 {strides = array<i32>} : memref<1x3x128xf32, #tpu.memory_space<vmem>>, vector<1x3x128xf32>,
    } else {
    }
    return
  }
  func.func @transform_0(%arg0: i32, %arg1: i32) -> (i32, i32, i32, i32) {
    %c0_i32 = arith.constant 0 : i32
    %c0_i32_0 = arith.constant 0 : i32
    %c0_i32_1 = arith.constant 0 : i32
    return %arg0, %arg1, %c0_i32, %c0_i32_0 : i32, i32, i32, i32
  }
  func.func @transform_1(%arg0: i32, %arg1: i32) -> (i32, i32, i32, i32) {
    %c0_i32 = arith.constant 0 : i32
    %c0_i32_0 = arith.constant 0 : i32
    %c0_i32_1 = arith.constant 0 : i32
    return %arg1, %arg0, %c0_i32, %c0_i32_0 : i32, i32, i32, i32
  }
  func.func @transform_2(%arg0: i32, %arg1: i32) -> (i32, i32, i32, i32) {
    %c0_i32 = arith.constant 0 : i32
    %c0_i32_0 = arith.constant 0 : i32
    %c0_i32_1 = arith.constant 0 : i32
    return %arg1, %arg0, %c0_i32, %c0_i32_0 : i32, i32, i32, i32
  }
  func.func @transform_3(%arg0: i32, %arg1: i32) -> (i32, i32, i32) {
    %c0_i32 = arith.constant 0 : i32
    %c0_i32_0 = arith.constant 0 : i32
    %c0_i32_1 = arith.constant 0 : i32
    return %arg0, %c0_i32, %c0_i32_0 : i32, i32, i32
  }
}

</mosaic_0001>

<llo_original>
// kernel: tpu_custom_call.1
$region0: #{tpu_custom_call.1}
  #allocation0 [shape = 'u32[]', space=smem, size = 0x4, offset = 0x4, fixed_abs, tag = 'smem constant byte address 0x4 - core index']
  #allocation1 [shape = 'u32[144,128]{1,0:T(1,128)}', space=vmem, size = 0x12000, scoped, tag = 'internal scratch']
  #allocation2 [shape = 'f32[3,16,128]{2,1,0:T(8,128)}', space=vmem, size = 0x6000, scoped, tag = 'scratch operand']
  #allocation8 [shape = 's32[]', space=sflag, size = 0x4, offset = 0, fixed_abs, tag = 'sflag constant byte address 0x0 - dummy sync flag']
  %s0 = inlined_call_operand.hbm [shape: f32[4,4,16,128], index: 0, kind: input, shape index: {}]
  %s1 = inlined_call_operand.hbm [shape: f32[4,4,16,128], index: 1, kind: input, shape index: {}]
  %s2 = inlined_call_operand.hbm [shape: f32[4,4,16,128], index: 2, kind: input, shape index: {}]
  %s3 = inlined_call_operand.vmem [shape: f32[1,3,128], index: 3, kind: output, shape index: {}]
  %s4 = sld [smem:[#allocation0]]
  $region65: #{tpu_custom_call.1} parent=0
    _
  %s6 = ssub.s32 1, %s4
  %s7 = scalar_select 0, %s6, %s4
  $region1: #{tpu_custom_call.1} parent=0
    #allocation3 [shape = 'u8[65536]{0}', space=vmem, size = 0x10000, scoped, tag = 'input window, operand 0']
    #allocation4 [shape = 's32[2]{0}', space=sflag, size = 0x8, scoped, tag = 'scoped memory for tpu_custom_call.1']
    #allocation5 [shape = 'u8[65536]{0}', space=vmem, size = 0x10000, scoped, tag = 'input window, operand 1']
    #allocation6 [shape = 's32[2]{0}', space=sflag, size = 0x8, scoped, tag = 'scoped memory for tpu_custom_call.1']
    #allocation7 [shape = 'u8[65536]{0}', space=vmem, size = 0x10000, scoped, tag = 'input window, operand 2']
    %8 = vsyncpa [#allocation4], 0
    %s9 = scalar_lea.sflag [#allocation4], 1
    %10 = vsyncpa %s9, 0
    %11 = vsyncpa [#allocation6], 0
    %s12 = scalar_lea.sflag [#allocation6], 1
    %13 = vsyncpa %s12, 0
    loop: start=0, step=1, limit=6
    $region2: #{tpu_custom_call.1} parent=1 // loop_pre_header
      _
    $region3: #{tpu_custom_call.1} parent=1 // loop_header
      %s15 = sphi 0, %s19
      %p16 = scmp.ge.s32.totalorder %s15, 6
      %s22 = sphi 0, %s34
      %s23 = sphi 0, %s30
      %s24 = sphi 0, %s22
      %s25 = sphi 0, %s23
      %s26 = sphi 0, %s24
      %s27 = sphi 0, %s25
      %s39 = sphi 0, %s41
      %s42 = sphi 0, %s39
      %s43 = sphi 0, %s42
      %s59 = sphi 0, %s43
      %s67 = sphi 0, %s69
      %s70 = sphi 0, %s67
      %s71 = sphi 0, %s70
      %s87 = sphi 0, %s71
      %s95 = sphi 0, %s97
      %s98 = sphi 0, %s95
      %s99 = sphi 0, %s98
      %s115 = sphi 0, %s99
      %s121 = sphi 0, %s123
      %s124 = sphi 0, %s121
      %s125 = sphi 0, %s124
      %s141 = sphi 0, %s125
    $region4: #{tpu_custom_call.1} parent=1 // loop_header_branch
      %18 = sbr.rel (%p16) target = $region8
    $region5: #{tpu_custom_call.1} parent=1 // loop_body
      %s20 = ssub.s32 %s15, 1
      %s21 = ssub.s32 %s15, 2
      %s28 = sadd.s32 1, %s23
      %p29 = scmp.ge.s32.totalorder %s28, 4
      %s30 = scalar_select %p29, 0, %s28
      %s31 = sadd.s32 1, %s22
      %s32 = scalar_select %p29, %s31, %s22
      %p33 = scmp.ge.s32.totalorder %s32, 1
      %s34 = scalar_select %p33, 0, %s32
      %s35 = ssub.s32 %s22, %s34
      %s36 = ssub.s32 %s23, %s30
      %s37 = sor.u32 %s35, %s36
      %p38 = scmp.eq.s32.totalorder %s37, 0
      %s40 = sadd.s32 %s39, 1
      %s41 = scalar_select %p38, %s39, %s40
      %p44 = pneg %p38
      %p45 = scmp.eq.s32.totalorder %s15, 3
      %p46 = por %p44, %p45
      %p47 = scmp.ne.s32.totalorder %s39, %s42
      %p48 = scmp.eq.s32.totalorder %s15, 0
      %p49 = por %p47, %p48
      %p50 = scmp.ne.s32.totalorder %s39, %s42
      %p51 = scmp.eq.s32.totalorder %s20, 3
      %p52 = por %p50, %p51
      %p53 = scmp.ne.s32.totalorder %s42, %s43
      %p54 = scmp.eq.s32.totalorder %s20, 0
      %p55 = por %p53, %p54
      %p56 = scmp.ne.s32.totalorder %s42, %s43
      %p57 = scmp.eq.s32.totalorder %s21, 3
      %p58 = por %p56, %p57
      %p60 = scmp.ne.s32.totalorder %s43, %s59
      %p61 = scmp.eq.s32.totalorder %s21, 0
      %p62 = por %p60, %p61
      %s63 = ssub.s32 %s23, %s30
      %s64 = ssub.s32 %s22, %s34
      %s65 = sor.u32 %s63, %s64
      %p66 = scmp.eq.s32.totalorder %s65, 0
      %s68 = sadd.s32 %s67, 1
      %s69 = scalar_select %p66, %s67, %s68
      %p72 = pneg %p66
      %p73 = scmp.eq.s32.totalorder %s15, 3
      %p74 = por %p72, %p73
      %p75 = scmp.ne.s32.totalorder %s67, %s70
      %p76 = scmp.eq.s32.totalorder %s15, 0
      %p77 = por %p75, %p76
      %p78 = scmp.ne.s32.totalorder %s67, %s70
      %p79 = scmp.eq.s32.totalorder %s20, 3
      %p80 = por %p78, %p79
      %p81 = scmp.ne.s32.totalorder %s70, %s71
      %p82 = scmp.eq.s32.totalorder %s20, 0
      %p83 = por %p81, %p82
      %p84 = scmp.ne.s32.totalorder %s70, %s71
      %p85 = scmp.eq.s32.totalorder %s21, 3
      %p86 = por %p84, %p85
      %p88 = scmp.ne.s32.totalorder %s71, %s87
      %p89 = scmp.eq.s32.totalorder %s21, 0
      %p90 = por %p88, %p89
      %s91 = ssub.s32 %s23, %s30
      %s92 = ssub.s32 %s22, %s34
      %s93 = sor.u32 %s91, %s92
      %p94 = scmp.eq.s32.totalorder %s93, 0
      %s96 = sadd.s32 %s95, 1
      %s97 = scalar_select %p94, %s95, %s96
      %p100 = pneg %p94
      %p101 = scmp.eq.s32.totalorder %s15, 3
      %p102 = por %p100, %p101
      %p103 = scmp.ne.s32.totalorder %s95, %s98
      %p104 = scmp.eq.s32.totalorder %s15, 0
      %p105 = por %p103, %p104
      %p106 = scmp.ne.s32.totalorder %s95, %s98
      %p107 = scmp.eq.s32.totalorder %s20, 3
      %p108 = por %p106, %p107
      %p109 = scmp.ne.s32.totalorder %s98, %s99
      %p110 = scmp.eq.s32.totalorder %s20, 0
      %p111 = por %p109, %p110
      %p112 = scmp.ne.s32.totalorder %s98, %s99
      %p113 = scmp.eq.s32.totalorder %s21, 3
      %p114 = por %p112, %p113
      %p116 = scmp.ne.s32.totalorder %s99, %s115
      %p117 = scmp.eq.s32.totalorder %s21, 0
      %p118 = por %p116, %p117
      %s119 = ssub.s32 %s22, %s34
      %p120 = scmp.eq.s32.totalorder %s119, 0
      %s122 = sadd.s32 %s121, 1
      %s123 = scalar_select %p120, %s121, %s122
      %p126 = pneg %p120
      %p127 = scmp.eq.s32.totalorder %s15, 3
      %p128 = por %p126, %p127
      %p129 = scmp.ne.s32.totalorder %s121, %s124
      %p130 = scmp.eq.s32.totalorder %s15, 0
      %p131 = por %p129, %p130
      %p132 = scmp.ne.s32.totalorder %s121, %s124
      %p133 = scmp.eq.s32.totalorder %s20, 3
      %p134 = por %p132, %p133
      %p135 = scmp.ne.s32.totalorder %s124, %s125
      %p136 = scmp.eq.s32.totalorder %s20, 0
      %p137 = por %p135, %p136
      %p138 = scmp.ne.s32.totalorder %s124, %s125
      %p139 = scmp.eq.s32.totalorder %s21, 3
      %p140 = por %p138, %p139
      %p142 = scmp.ne.s32.totalorder %s125, %s141
      %p143 = scmp.eq.s32.totalorder %s21, 0
      %p144 = por %p142, %p143
      %p145 = scmp.le.s32.totalorder 1, %s15
      %p146 = scmp.lt.s32.totalorder %s15, 5
      %p147 = pnand %p145, %p146
      %p148 = pneg %p147
      // Predicated region
      $region9: #{tpu_custom_call.1} parent=5 // pred_check
        _
      $region10: #{tpu_custom_call.1} parent=5 // pred_check_branch
        %150 = sbr.rel (%p147) target = $region12
      $region11: #{tpu_custom_call.1} parent=5 // pred_region
        %s151 = ssub.s32 %s15, 1
      $region12: #{tpu_custom_call.1} parent=5 // pred_fallthru
        _
      %p152 = scmp.lt.s32.totalorder %s15, 4
      // Predicated region
      $region13: #{tpu_custom_call.1} parent=5 // pred_check
        %p153 = pneg %p152
      $region14: #{tpu_custom_call.1} parent=5 // pred_check_branch
        %155 = sbr.rel (%p153) target = $region16
      $region15: #{tpu_custom_call.1} parent=5 // pred_region
        // Predicated region
        $region17: #{tpu_custom_call.1} parent=15 // pred_check
          %p156 = pneg %p49
        $region18: #{tpu_custom_call.1} parent=15 // pred_check_branch
          %158 = sbr.rel (%p156) target = $region20
        $region19: #{tpu_custom_call.1} parent=15 // pred_region
          #allocation9 [shape = 'u32[6]{0}', space=smem, size = 0x18, scoped, tag = 'DMA stride descriptor']
          %s159 = sand.u32 %s39, 1
          %s160 = scalar_lea.sflag [#allocation4], %s159
          %s161 = sand.u32 %s39, 1
          %s162 = smul.addr %s161, 64
          %s163 = scalar_lea.vmem [#allocation3], %s162
          %s164 = smul.u32 4, %s22
          %s166 = ssub.s32 1024, 1024
          %167 = vsyncadd %s160, %s166
          %s168 = smul.addr %s23, 2
          %s169 = smul.addr %s164, 8
          %s170 = sadd.s32 %s168, %s169
          %s171 = smul.addr %s170, 128
          %s172 = scalar_lea.hbm %s0, %s171
          %s174 = sshll.u32 1, 14
          %s175 = sxor.u32 4294967295, %s174
          %s177 = sld [smem:[#allocation0]]
          %s178 = sadd.s32 2, %s177
          %s180 = sshll.u32 7, 26
          %s181 = sxor.u32 4294967295, %s180
          %s182 = sand.u32 0, %s181
          %s183 = sshll.u32 %s178, 26
          %s184 = sor.u32 %s182, %s183
          %s185 = sshll.u32 %s163, 4
          %s186 = int_to_ptr.vmem [resolvable:$true] %s185
          %192 = sst [smem:[#allocation9]] 1024
          %s193 = scalar_lea.smem [#allocation9], 1
          %194 = sst [smem:[%s193]] 256
          %s195 = scalar_lea.smem [#allocation9], 2
          %196 = sst [smem:[%s195]] 2
          %s197 = scalar_lea.smem [#allocation9], 3
          %198 = sst [smem:[%s197]] 128
          %s199 = scalar_lea.smem [#allocation9], 4
          %200 = sst [smem:[%s199]] 128
          %s201 = scalar_lea.smem [#allocation9], 5
          %202 = sst [smem:[%s201]] 8
          %204 = dma.general %s172, 1024, %s186, %s160, [#allocation8], [#allocation9], %s184, 0
        $region20: #{tpu_custom_call.1} parent=15 // pred_fallthru
          _
        // Predicated region
        $region21: #{tpu_custom_call.1} parent=15 // pred_check
          %p205 = pneg %p77
        $region22: #{tpu_custom_call.1} parent=15 // pred_check_branch
          %207 = sbr.rel (%p205) target = $region24
        $region23: #{tpu_custom_call.1} parent=15 // pred_region
          %s208 = sand.u32 %s15, 1
          %s209 = scalar_lea.sflag [#allocation6], %s208
          %s210 = sand.u32 %s67, 1
          %s211 = smul.addr %s210, 64
          %s212 = scalar_lea.vmem [#allocation5], %s211
          %s213 = smul.u32 4, %s22
          %s215 = ssub.s32 1024, 1024
          %216 = vsyncadd %s209, %s215
          %s217 = smul.addr %s213, 2
          %s218 = smul.addr %s23, 8
          %s219 = sadd.s32 %s217, %s218
          %s220 = smul.addr %s219, 128
          %s221 = scalar_lea.hbm %s1, %s220
          %s222 = sshll.u32 %s212, 4
          %s223 = int_to_ptr.vmem [resolvable:$true] %s222
          %228 = dma.hbm_to_vmem [thread:$0]  %s221, 1024, %s223, %s209, 128, 128, 8
        $region24: #{tpu_custom_call.1} parent=15 // pred_fallthru
          _
        // Predicated region
        $region25: #{tpu_custom_call.1} parent=15 // pred_check
          %p229 = pneg %p105
        $region26: #{tpu_custom_call.1} parent=15 // pred_check_branch
          %231 = sbr.rel (%p229) target = $region28
        $region27: #{tpu_custom_call.1} parent=15 // pred_region
          %s232 = sand.u32 %s15, 1
          %s233 = scalar_lea.sflag [#allocation6], %s232
          %s234 = sand.u32 %s95, 1
          %s235 = smul.addr %s234, 64
          %s236 = scalar_lea.vmem [#allocation7], %s235
          %s237 = smul.u32 4, %s22
          %s239 = ssub.s32 1024, 1024
          %240 = vsyncadd %s233, %s239
          %s241 = smul.addr %s237, 2
          %s242 = smul.addr %s23, 8
          %s243 = sadd.s32 %s241, %s242
          %s244 = smul.addr %s243, 128
          %s245 = scalar_lea.hbm %s2, %s244
          %s246 = sshll.u32 %s236, 4
          %s247 = int_to_ptr.vmem [resolvable:$true] %s246
          %252 = dma.hbm_to_vmem [thread:$0]  %s245, 1024, %s247, %s233, 128, 128, 8
        $region28: #{tpu_custom_call.1} parent=15 // pred_fallthru
          _
      $region16: #{tpu_custom_call.1} parent=5 // pred_fallthru
        _
      %p253 = scmp.le.s32.totalorder 1, %s15
      %p254 = scmp.lt.s32.totalorder %s15, 5
      %p255 = pnand %p253, %p254
      %p256 = pneg %p255
      // Predicated region
      $region29: #{tpu_custom_call.1} parent=5 // pred_check
        _
      $region30: #{tpu_custom_call.1} parent=5 // pred_check_branch
        %258 = sbr.rel (%p255) target = $region32
      $region31: #{tpu_custom_call.1} parent=5 // pred_region
        %s259 = ssub.s32 %s15, 1
        %s260 = sand.u32 %s42, 1
        %s261 = scalar_lea.sflag [#allocation4], %s260
        %s262 = sand.u32 %s42, 1
        %s263 = smul.addr %s262, 64
        %s264 = scalar_lea.vmem [#allocation3], %s263
        // Predicated region
        $region33: #{tpu_custom_call.1} parent=31 // pred_check
          %p265 = pneg %p55
        $region34: #{tpu_custom_call.1} parent=31 // pred_check_branch
          %267 = sbr.rel (%p265) target = $region36
        $region35: #{tpu_custom_call.1} parent=31 // pred_region
          %268 = dma.done %s261, 1024
        $region36: #{tpu_custom_call.1} parent=31 // pred_fallthru
          _
        %s269 = sand.u32 %s20, 1
        %s270 = scalar_lea.sflag [#allocation6], %s269
        %s271 = sand.u32 %s70, 1
        %s272 = smul.addr %s271, 64
        %s273 = scalar_lea.vmem [#allocation5], %s272
        // Predicated region
        $region37: #{tpu_custom_call.1} parent=31 // pred_check
          %p274 = pneg %p83
        $region38: #{tpu_custom_call.1} parent=31 // pred_check_branch
          %276 = sbr.rel (%p274) target = $region40
        $region39: #{tpu_custom_call.1} parent=31 // pred_region
          %277 = dma.done %s270, 1024
        $region40: #{tpu_custom_call.1} parent=31 // pred_fallthru
          _
        %s278 = sand.u32 %s20, 1
        %s279 = scalar_lea.sflag [#allocation6], %s278
        %s280 = sand.u32 %s98, 1
        %s281 = smul.addr %s280, 64
        %s282 = scalar_lea.vmem [#allocation7], %s281
        // Predicated region
        $region41: #{tpu_custom_call.1} parent=31 // pred_check
          %p283 = pneg %p111
        $region42: #{tpu_custom_call.1} parent=31 // pred_check_branch
          %285 = sbr.rel (%p283) target = $region44
        $region43: #{tpu_custom_call.1} parent=31 // pred_region
          %286 = dma.done %s279, 1024
        $region44: #{tpu_custom_call.1} parent=31 // pred_fallthru
          _
        %s287 = sand.u32 %s42, 1
        %s288 = scalar_lea.sflag [#allocation4], %s287
        %s289 = sand.u32 %s42, 1
        %s290 = smul.addr %s289, 64
        %s291 = scalar_lea.vmem [#allocation3], %s290
        %p292 = pneg %p55
        %p293 = pneg %p52
        %s294 = sand.u32 %s20, 1
        %s295 = scalar_lea.sflag [#allocation6], %s294
        %s296 = sand.u32 %s70, 1
        %s297 = smul.addr %s296, 64
        %s298 = scalar_lea.vmem [#allocation5], %s297
        %p299 = pneg %p83
        %p300 = pneg %p80
        %s301 = sand.u32 %s20, 1
        %s302 = scalar_lea.sflag [#allocation6], %s301
        %s303 = sand.u32 %s98, 1
        %s304 = smul.addr %s303, 64
        %s305 = scalar_lea.vmem [#allocation7], %s304
        %p306 = pneg %p111
        %p307 = pneg %p108
        %p308 = pneg %p137
        %p309 = pneg %p134
        %p310 = scmp.lt.s32.totalorder %s24, 0
        %s311 = scalar_select %p310, %s24, 0
        %s312 = smul.addr %s311, 4
        %s313 = scalar_lea.vmem %s3, %s312
        %s314 = smul.u32 4, %s24
        %s315 = smul.u32 4, %s24
        %s316 = smul.u32 4, %s24
        %p317 = scmp.lt.s32.totalorder %s24, 0
        %s318 = scalar_select %p317, %s24, 0
        %s319 = smul.addr %s318, 4
        %s320 = scalar_lea.vmem %s3, %s319
        %p321 = scmp.eq.s32.totalorder %s25, 0
        // Predicated region
        $region45: #{tpu_custom_call.1} parent=31 // pred_check
          %p322 = pneg %p321
        $region46: #{tpu_custom_call.1} parent=31 // pred_check_branch
          %324 = sbr.rel (%p322) target = $region48
        $region47: #{tpu_custom_call.1} parent=31 // pred_region
          %325 = vst [vmem:[#allocation2] sm:$0xff] 0.0
          %326 = vst [vmem:[#allocation2 + $0x8] sm:$0xff] 0.0
          %327 = vst [vmem:[#allocation2 + $0x10] sm:$0xff] 0.0
          %328 = vst [vmem:[#allocation2 + $0x18] sm:$0xff] 0.0
          %329 = vst [vmem:[#allocation2 + $0x20] sm:$0xff] 0.0
          %330 = vst [vmem:[#allocation2 + $0x28] sm:$0xff] 0.0
        $region48: #{tpu_custom_call.1} parent=31 // pred_fallthru
          _
        %v331 = vld [vmem:[%s264] sm:$0xff]
        %v332 = vld [vmem:[%s264 + $0x8] sm:$0xff]
        %v333 = vld [vmem:[%s264 + $0x10] sm:$0xff]
        %v334 = vld [vmem:[%s264 + $0x18] sm:$0xff]
        %v335 = vld [vmem:[%s264 + $0x20] sm:$0xff]
        %v336 = vld [vmem:[%s264 + $0x28] sm:$0xff]
        %v337 = vld [vmem:[%s264 + $0x30] sm:$0xff]
        %v338 = vld [vmem:[%s264 + $0x38] sm:$0xff]
        %v339 = vld [vmem:[%s273] sm:$0xff]
        %v340 = vld [vmem:[%s273 + $0x8] sm:$0xff]
        %v341 = vld [vmem:[%s273 + $0x10] sm:$0xff]
        %v342 = vld [vmem:[%s273 + $0x18] sm:$0xff]
        %v343 = vld [vmem:[%s273 + $0x20] sm:$0xff]
        %v344 = vld [vmem:[%s273 + $0x28] sm:$0xff]
        %v345 = vld [vmem:[%s273 + $0x30] sm:$0xff]
        %v346 = vld [vmem:[%s273 + $0x38] sm:$0xff]
        %v347 = vld [vmem:[%s282] sm:$0xff]
        %v348 = vld [vmem:[%s282 + $0x8] sm:$0xff]
        %v349 = vld [vmem:[%s282 + $0x10] sm:$0xff]
        %v350 = vld [vmem:[%s282 + $0x18] sm:$0xff]
        %v351 = vld [vmem:[%s282 + $0x20] sm:$0xff]
        %v352 = vld [vmem:[%s282 + $0x28] sm:$0xff]
        %v353 = vld [vmem:[%s282 + $0x30] sm:$0xff]
        %v354 = vld [vmem:[%s282 + $0x38] sm:$0xff]
        %v355 = vsub.f32 %v331, %v339
        %v356 = vsub.f32 %v332, %v340
        %v357 = vsub.f32 %v333, %v341
        %v358 = vsub.f32 %v334, %v342
        %v359 = vsub.f32 %v335, %v343
        %v360 = vsub.f32 %v336, %v344
        %v361 = vsub.f32 %v337, %v345
        %v362 = vsub.f32 %v338, %v346
        %v363 = vand.u32 2147483647, %v355
        %v364 = vand.u32 2147483647, %v356
        %v365 = vand.u32 2147483647, %v357
        %v366 = vand.u32 2147483647, %v358
        %v367 = vand.u32 2147483647, %v359
        %v368 = vand.u32 2147483647, %v360
        %v369 = vand.u32 2147483647, %v361
        %v370 = vand.u32 2147483647, %v362
        %vm371 = vcmp.ge.f32.partialorder %v339, 2.0
        %vm372 = vcmp.ge.f32.partialorder %v340, 2.0
        %vm373 = vcmp.ge.f32.partialorder %v341, 2.0
        %vm374 = vcmp.ge.f32.partialorder %v342, 2.0
        %vm375 = vcmp.ge.f32.partialorder %v343, 2.0
        %vm376 = vcmp.ge.f32.partialorder %v344, 2.0
        %vm377 = vcmp.ge.f32.partialorder %v345, 2.0
        %vm378 = vcmp.ge.f32.partialorder %v346, 2.0
        %v379 = vsel %vm371, 2.0, 1.0
        %v380 = vsel %vm372, 2.0, 1.0
        %v381 = vsel %vm373, 2.0, 1.0
        %v382 = vsel %vm374, 2.0, 1.0
        %v383 = vsel %vm375, 2.0, 1.0
        %v384 = vsel %vm376, 2.0, 1.0
        %v385 = vsel %vm377, 2.0, 1.0
        %v386 = vsel %vm378, 2.0, 1.0
        %vm387 = vcmp.ge.f32.partialorder %v339, 5.0
        %vm388 = vcmp.ge.f32.partialorder %v340, 5.0
        %vm389 = vcmp.ge.f32.partialorder %v341, 5.0
        %vm390 = vcmp.ge.f32.partialorder %v342, 5.0
        %vm391 = vcmp.ge.f32.partialorder %v343, 5.0
        %vm392 = vcmp.ge.f32.partialorder %v344, 5.0
        %vm393 = vcmp.ge.f32.partialorder %v345, 5.0
        %vm394 = vcmp.ge.f32.partialorder %v346, 5.0
        %v395 = vsel %vm387, 5.0, %v379
        %v396 = vsel %vm388, 5.0, %v380
        %v397 = vsel %vm389, 5.0, %v381
        %v398 = vsel %vm390, 5.0, %v382
        %v399 = vsel %vm391, 5.0, %v383
        %v400 = vsel %vm392, 5.0, %v384
        %v401 = vsel %vm393, 5.0, %v385
        %v402 = vsel %vm394, 5.0, %v386
        %vm403 = vcmp.ge.f32.partialorder %v339, 10.0
        %vm404 = vcmp.ge.f32.partialorder %v340, 10.0
        %vm405 = vcmp.ge.f32.partialorder %v341, 10.0
        %vm406 = vcmp.ge.f32.partialorder %v342, 10.0
        %vm407 = vcmp.ge.f32.partialorder %v343, 10.0
        %vm408 = vcmp.ge.f32.partialorder %v344, 10.0
        %vm409 = vcmp.ge.f32.partialorder %v345, 10.0
        %vm410 = vcmp.ge.f32.partialorder %v346, 10.0
        %v411 = vsel %vm403, 10.0, %v395
        %v412 = vsel %vm404, 10.0, %v396
        %v413 = vsel %vm405, 10.0, %v397
        %v414 = vsel %vm406, 10.0, %v398
        %v415 = vsel %vm407, 10.0, %v399
        %v416 = vsel %vm408, 10.0, %v400
        %v417 = vsel %vm409, 10.0, %v401
        %v418 = vsel %vm410, 10.0, %v402
        %vm419 = vcmp.ge.f32.partialorder %v339, 30.0
        %vm420 = vcmp.ge.f32.partialorder %v340, 30.0
        %vm421 = vcmp.ge.f32.partialorder %v341, 30.0
        %vm422 = vcmp.ge.f32.partialorder %v342, 30.0
        %vm423 = vcmp.ge.f32.partialorder %v343, 30.0
        %vm424 = vcmp.ge.f32.partialorder %v344, 30.0
        %vm425 = vcmp.ge.f32.partialorder %v345, 30.0
        %vm426 = vcmp.ge.f32.partialorder %v346, 30.0
        %v427 = vsel %vm419, 30.0, %v411
        %v428 = vsel %vm420, 30.0, %v412
        %v429 = vsel %vm421, 30.0, %v413
        %v430 = vsel %vm422, 30.0, %v414
        %v431 = vsel %vm423, 30.0, %v415
        %v432 = vsel %vm424, 30.0, %v416
        %v433 = vsel %vm425, 30.0, %v417
        %v434 = vsel %vm426, 30.0, %v418
        %v435 = vmul.f32 %v347, %v363
        %v436 = vmul.f32 %v348, %v364
        %v437 = vmul.f32 %v349, %v365
        %v438 = vmul.f32 %v350, %v366
        %v439 = vmul.f32 %v351, %v367
        %v440 = vmul.f32 %v352, %v368
        %v441 = vmul.f32 %v353, %v369
        %v442 = vmul.f32 %v354, %v370
        %v443 = vld [vmem:[#allocation2] sm:$0xff]
        %v444 = vld [vmem:[#allocation2 + $0x8] sm:$0xff]
        %v445 = vmul.f32 %v427, %v435
        %v446 = vmul.f32 %v428, %v436
        %v447 = vmul.f32 %v429, %v437
        %v448 = vmul.f32 %v430, %v438
        %v449 = vmul.f32 %v431, %v439
        %v450 = vmul.f32 %v432, %v440
        %v451 = vmul.f32 %v433, %v441
        %v452 = vmul.f32 %v434, %v442
        %v453 = vadd.f32 %v445, %v447
        %v454 = vadd.f32 %v453, %v449
        %v455 = vadd.f32 %v454, %v451
        %v456 = vadd.f32 %v446, %v448
        %v457 = vadd.f32 %v456, %v450
        %v458 = vadd.f32 %v457, %v452
        %v459 = vadd.f32 %v443, %v455
        %v460 = vadd.f32 %v444, %v458
        %461 = vst [vmem:[#allocation2] sm:$0xff] %v459
        %462 = vst [vmem:[#allocation2 + $0x8] sm:$0xff] %v460
        %s463 = scalar_lea.vmem [#allocation2], 16
        %v464 = vld [vmem:[%s463] sm:$0xff]
        %v465 = vld [vmem:[%s463 + $0x8] sm:$0xff]
        %v466 = vsub.f32 %v363, %v435
        %v467 = vsub.f32 %v364, %v436
        %v468 = vsub.f32 %v365, %v437
        %v469 = vsub.f32 %v366, %v438
        %v470 = vsub.f32 %v367, %v439
        %v471 = vsub.f32 %v368, %v440
        %v472 = vsub.f32 %v369, %v441
        %v473 = vsub.f32 %v370, %v442
        %v474 = vadd.f32 %v466, %v468
        %v475 = vadd.f32 %v474, %v470
        %v476 = vadd.f32 %v475, %v472
        %v477 = vadd.f32 %v467, %v469
        %v478 = vadd.f32 %v477, %v471
        %v479 = vadd.f32 %v478, %v473
        %v480 = vadd.f32 %v464, %v476
        %v481 = vadd.f32 %v465, %v479
        %482 = vst [vmem:[%s463] sm:$0xff] %v480
        %483 = vst [vmem:[%s463 + $0x8] sm:$0xff] %v481
        %s484 = scalar_lea.vmem [#allocation2], 32
        %v485 = vld [vmem:[%s484] sm:$0xff]
        %v486 = vld [vmem:[%s484 + $0x8] sm:$0xff]
        %v487 = vadd.f32 %v347, %v349
        %v488 = vadd.f32 %v487, %v351
        %v489 = vadd.f32 %v488, %v353
        %v490 = vadd.f32 %v348, %v350
        %v491 = vadd.f32 %v490, %v352
        %v492 = vadd.f32 %v491, %v354
        %v493 = vadd.f32 %v485, %v489
        %v494 = vadd.f32 %v486, %v492
        %495 = vst [vmem:[%s484] sm:$0xff] %v493
        %496 = vst [vmem:[%s484 + $0x8] sm:$0xff] %v494
        %p497 = scmp.eq.s32.totalorder %s25, 3
        // Predicated region
        $region49: #{tpu_custom_call.1} parent=31 // pred_check
          %p498 = pneg %p497
        $region50: #{tpu_custom_call.1} parent=31 // pred_check_branch
          %500 = sbr.rel (%p498) target = $region52
        $region51: #{tpu_custom_call.1} parent=31 // pred_region
          %v501 = vld [vmem:[#allocation2] sm:$0xff]
          %v502 = vld [vmem:[#allocation2 + $0x8] sm:$0xff]
          %v503 = vld [vmem:[#allocation2 + $0x10] sm:$0xff]
          %v504 = vld [vmem:[#allocation2 + $0x18] sm:$0xff]
          %v505 = vld [vmem:[#allocation2 + $0x20] sm:$0xff]
          %v506 = vld [vmem:[#allocation2 + $0x28] sm:$0xff]
          %v507 = vadd.f32 %v501, %v502
          %v508 = vrot.slane %v507, 4
          %v509 = vadd.f32 %v507, %v508
          %v510 = vrot.slane %v509, 2
          %v511 = vadd.f32 %v509, %v510
          %v512 = vrot.slane %v511, 1
          %v513 = vadd.f32 %v511, %v512
          %v514 = vadd.f32 %v503, %v504
          %v515 = vrot.slane %v514, 4
          %v516 = vadd.f32 %v514, %v515
          %v517 = vrot.slane %v516, 2
          %v518 = vadd.f32 %v516, %v517
          %v519 = vrot.slane %v518, 1
          %v520 = vadd.f32 %v518, %v519
          %v521 = vadd.f32 %v505, %v506
          %v522 = vrot.slane %v521, 4
          %v523 = vadd.f32 %v521, %v522
          %v524 = vrot.slane %v523, 2
          %v525 = vadd.f32 %v523, %v524
          %v526 = vrot.slane %v525, 1
          %v527 = vadd.f32 %v525, %v526
          %vm531 = vcmask 1041409
          %v532 = vsel %vm531, %v520, %v513
          %vm533 = vcmask 1042434
          %v534 = vsel %vm533, %v527, %v532
          %536 = vst [vmem:[%s320] sm:$0x7] %v534
        $region52: #{tpu_custom_call.1} parent=31 // pred_fallthru
          _
        %p537 = scmp.lt.s32.totalorder %s24, 0
        %s538 = scalar_select %p537, %s24, 0
        %s539 = smul.addr %s538, 4
        %s540 = scalar_lea.vmem %s3, %s539
        // Predicated region
        $region53: #{tpu_custom_call.1} parent=31 // pred_check
          %p541 = pneg %p134
        $region54: #{tpu_custom_call.1} parent=31 // pred_check_branch
          %543 = sbr.rel (%p541) target = $region56
        $region55: #{tpu_custom_call.1} parent=31 // pred_region
          _
        $region56: #{tpu_custom_call.1} parent=31 // pred_fallthru
          _
        // Predicated region
        $region57: #{tpu_custom_call.1} parent=31 // pred_check
          %p544 = pneg %p134
        $region58: #{tpu_custom_call.1} parent=31 // pred_check_branch
          %546 = sbr.rel (%p544) target = $region60
        $region59: #{tpu_custom_call.1} parent=31 // pred_region
          %p547 = scmp.lt.s32.totalorder %s24, 0
          %s548 = scalar_select %p547, %s24, 0
          %s549 = smul.addr %s548, 4
          %s550 = scalar_lea.vmem %s3, %s549
        $region60: #{tpu_custom_call.1} parent=31 // pred_fallthru
          _
      $region32: #{tpu_custom_call.1} parent=5 // pred_fallthru
        _
      %p551 = scmp.le.s32.totalorder 2, %s15
      // Predicated region
      $region61: #{tpu_custom_call.1} parent=5 // pred_check
        %p552 = pneg %p551
      $region62: #{tpu_custom_call.1} parent=5 // pred_check_branch
        %554 = sbr.rel (%p552) target = $region64
      $region63: #{tpu_custom_call.1} parent=5 // pred_region
        %s555 = ssub.s32 %s15, 2
      $region64: #{tpu_custom_call.1} parent=5 // pred_fallthru
        _
    $region6: #{tpu_custom_call.1} parent=1 // loop_footer
      %s19 = sadd.s32 1, %s15
    $region7: #{tpu_custom_call.1} parent=1 // loop_footer_branch
      %14 = sbr.rel target = $region3
    $region8: #{tpu_custom_call.1} parent=1 // loop_exit
      _
    %556 = vsyncpa [#allocation4], 1
    %s557 = scalar_lea.sflag [#allocation4], 1
    %558 = vsyncpa %s557, 1
    %559 = vsyncpa [#allocation6], 1
    %s560 = scalar_lea.sflag [#allocation6], 1
    %561 = vsyncpa %s560, 1

</llo_original>
